<compile_context>
chip_gen: v7x
topology: tpu7x:2x2x1
jax: 0.10.0
libtpu: 0.0.40
codegen_flags: <defaults>
</compile_context>

<pallas_src>
import functools

import jax
import jax.numpy as jnp
from jax import lax
from jax.experimental import pallas as pl
from jax.experimental.pallas import tpu as pltpu


# --------------------------------------------------------------------------- #
# Per-tile math
# --------------------------------------------------------------------------- #
def _tile_loss(x, t, alpha, ct):
    """mean_c(log_softmax(x)_c * softmax(alpha*t)_c) for one (C, L) tile.

    Channels on axis 0 (sublane), pixels on axis 1 (lane).  Uses
        mean_c(logp_c * soft_c) = (inv * sum_c(xs_c * te_c) - lse) / C
    where soft = te * inv (softmax sums to 1), keeping the reciprocal out of
    the (C, L) work.  Returns an f32 array of shape (1, L).
    """
    x = x.astype(jnp.float32)
    t = t.astype(jnp.float32)
    if alpha != 1.0:
        t = t * jnp.float32(alpha)

    xs = x - jnp.max(x, axis=0, keepdims=True)
    lse = jnp.log(jnp.sum(jnp.exp(xs), axis=0, keepdims=True))          # (1, L)

    ts = t - jnp.max(t, axis=0, keepdims=True)
    te = jnp.exp(ts)
    denom = jnp.sum(te, axis=0, keepdims=True)                          # (1, L)
    # EUP approximate reciprocal + one Newton refinement (off the VALU slot,
    # well within f32 tolerance).
    inv = pl.reciprocal(denom, approx=True)
    inv = inv * (jnp.float32(2.0) - denom * inv)

    s1 = jnp.sum(xs * te, axis=0, keepdims=True)                        # (1, L)
    return (s1 * inv - lse) * jnp.float32(1.0 / ct)


# --------------------------------------------------------------------------- #
# Kernels
# --------------------------------------------------------------------------- #
def _kd_reduce_kernel(*refs, alpha, ct, hw, tile_hw, has_mask, need_lane_mask):
    """Per-(image, tile) partial sums for reduction in {'mean', 'sum'}."""
    if has_mask:
        x_ref, t_ref, m_ref, out_ref = refs
    else:
        x_ref, t_ref, out_ref = refs
        m_ref = None

    loss = _tile_loss(x_ref[0, :ct, :], t_ref[0], alpha, ct)            # (1, L)
    if has_mask:
        loss = loss * m_ref[0].astype(jnp.float32)

    if need_lane_mask:
        j = pl.program_id(1)
        is_last = j == pl.num_programs(1) - 1

        @pl.when(jnp.logical_not(is_last))
        def _():
            out_ref[0, 0] = jnp.sum(loss, keepdims=True)

        @pl.when(is_last)
        def _():
            # Only the ragged final tile pays for the lane mask.  jnp.where
            # (not multiply) keeps NaN/Inf from padded lanes out of the sum.
            lane = lax.broadcasted_iota(jnp.int32, loss.shape, 1) + j * tile_hw
            good = jnp.where(lane < hw, loss, jnp.float32(0.0))
            out_ref[0, 0] = jnp.sum(good, keepdims=True)
    else:
        out_ref[0, 0] = jnp.sum(loss, keepdims=True)


def _kd_none_kernel(*refs, alpha, ct, has_mask):
    """Per-pixel loss for reduction == 'none' (lane-dense output)."""
    if has_mask:
        x_ref, t_ref, m_ref, o_ref = refs
    else:
        x_ref, t_ref, o_ref = refs
        m_ref = None

    loss = _tile_loss(x_ref[0, :ct, :], t_ref[0], alpha, ct)            # (1, L)
    if has_mask:
        loss = loss * m_ref[0].astype(jnp.float32)
    # Padded lanes of a ragged last tile hold garbage but are truncated by
    # Pallas on writeback; softmax is per-lane so valid lanes are unaffected.
    o_ref[0] = -loss


# --------------------------------------------------------------------------- #
# VMEM accounting helpers (padded footprints)
# --------------------------------------------------------------------------- #
def _sublane_pack(dtype):
    # 8 rows for 32-bit, 16 for 16-bit, 32 for 8-bit.
    return max(1, 32 // jnp.dtype(dtype).itemsize)


def _padded_lane_bytes(rows, dtype):
    """Bytes per lane of one VMEM block with `rows` sublanes, after padding."""
    pack = _sublane_pack(dtype)
    padded = -(-rows // pack) * pack
    return padded * jnp.dtype(dtype).itemsize


# --------------------------------------------------------------------------- #
# Wrapper
# --------------------------------------------------------------------------- #
def knowledge_distillation_loss(inputs, targets, mask=None, *, reduction="mean",
                                alpha=1.0, _force_tile_hw=None):
    """Pallas implementation of KnowledgeDistillationLoss.forward.

    inputs : (N, C_in, H, W)  student logits (any float dtype)
    targets: (N, C_t,  H, W)  teacher logits, C_t <= C_in
    mask   : optional (N, H, W)
    """
    N, C_in, H, W = inputs.shape
    Ct = targets.shape[1]
    HW = H * W

    # Free reshapes (contiguous), native dtype — no transpose / up-cast / pad.
    x = inputs.reshape(N, C_in, HW)
    t = targets.reshape(N, Ct, HW)

    # ---- student channels: avoid DMA-ing the unused C_in - Ct channels ------
    pack_x = _sublane_pack(inputs.dtype)
    if Ct == C_in:
        x_cblk = C_in
    elif Ct % pack_x == 0:
        x_cblk = Ct                       # block covers only the first Ct channels
    elif C_in > 3 * Ct:
        x = x[:, :Ct, :]                  # one-time XLA slice; cheaper than the
        C_in = Ct                         # wasted per-step DMA when C_in >> Ct
        x_cblk = Ct
    else:
        x_cblk = C_in                     # DMA all channels, static slice in-kernel

    # ---- mask: no f32 up-cast in the wrapper --------------------------------
    has_mask = mask is not None
    if has_mask:
        if jnp.issubdtype(mask.dtype, jnp.floating):
            m = mask.reshape(N, 1, HW)                      # pass through as-is
        else:
            mdt = (inputs.dtype if jnp.issubdtype(inputs.dtype, jnp.floating)
                   else jnp.float32)
            m = mask.reshape(N, 1, HW).astype(mdt)
    else:
        m = None

    # ---- VMEM-aware tile sizing (padded footprints, x2 pipeline buffers) ----
    try:
        vmem_physical = int(pltpu.get_tpu_info().vmem_capacity_bytes)
    except Exception:                     # pragma: no cover - conservative fallback
        vmem_physical = 64 * 1024 * 1024  # v7x has the smallest per-TC VMEM

    per_lane = (_padded_lane_bytes(x_cblk, inputs.dtype)
                + _padded_lane_bytes(Ct, targets.dtype))
    if has_mask:
        per_lane += _padded_lane_bytes(1, m.dtype)
    if reduction not in ("mean", "sum"):
        per_lane += _padded_lane_bytes(1, jnp.float32)      # 'none' output block
    per_lane *= 2                                           # double buffering

    pipeline_budget = min(40 << 20, int(vmem_physical * 0.55))
    max_tile = max(128, (pipeline_budget // per_lane) // 128 * 128)
    if _force_tile_hw is not None:                          # test hook
        tile_hw = int(_force_tile_hw) if _force_tile_hw < HW else HW
    elif HW <= max_tile:
        tile_hw = HW                      # one full-width tile (ragged HW OK)
    else:
        tile_hw = max_tile
    num_tiles = pl.cdiv(HW, tile_hw)
    need_lane_mask = (HW % tile_hw) != 0
    grid = (N, num_tiles)

    vmem_needed = per_lane * tile_hw + (2 << 20)            # + headroom
    vmem_limit = int(min(vmem_physical * 9 // 10,
                         max(32 << 20, vmem_needed + (6 << 20))))

    in_specs = [
        pl.BlockSpec((1, x_cblk, tile_hw), lambda n, j: (n, 0, j)),
        pl.BlockSpec((1, Ct, tile_hw), lambda n, j: (n, 0, j)),
    ]
    args = [x, t]
    if has_mask:
        in_specs.append(pl.BlockSpec((1, 1, tile_hw), lambda n, j: (n, 0, j)))
        args.append(m)

    if reduction in ("mean", "sum"):
        kern = functools.partial(
            _kd_reduce_kernel, alpha=float(alpha), ct=Ct, hw=HW, tile_hw=tile_hw,
            has_mask=has_mask, need_lane_mask=need_lane_mask)
        # Per-(n, tile) partials: every grid point writes its own block, so both
        # axes are "parallel" (uses both v7x TCs even at N == 1).
        partials = pl.pallas_call(
            kern,
            out_shape=jax.ShapeDtypeStruct((N, num_tiles, 1, 1), jnp.float32),
            grid_spec=pltpu.PrefetchScalarGridSpec(
                num_scalar_prefetch=0,
                grid=grid,
                in_specs=in_specs,
                out_specs=pl.BlockSpec((1, 1, 1, 1), lambda n, j: (n, j, 0, 0)),
            ),
            compiler_params=pltpu.CompilerParams(
                dimension_semantics=("parallel", "parallel"),
                vmem_limit_bytes=vmem_limit),
        )(*args)
        total = jnp.sum(partials)          # tiny (N * num_tiles) combine in JAX
        if reduction == "mean":
            return -(total / jnp.float32(N * HW))
        return -total
    else:  # 'none'
        kern = functools.partial(_kd_none_kernel, alpha=float(alpha), ct=Ct,
                                 has_mask=has_mask)
        out = pl.pallas_call(
            kern,
            out_shape=jax.ShapeDtypeStruct((N, 1, HW), jnp.float32),
            grid_spec=pltpu.PrefetchScalarGridSpec(
                num_scalar_prefetch=0,
                grid=grid,
                in_specs=in_specs,
                out_specs=pl.BlockSpec((1, 1, tile_hw), lambda n, j: (n, 0, j)),
            ),
            compiler_params=pltpu.CompilerParams(
                dimension_semantics=("parallel", "parallel"),
                vmem_limit_bytes=vmem_limit),
        )(*args)
        return out.reshape(N, H, W)


# --------------------------------------------------------------------------- #
# Pure-JAX reference mirroring the PyTorch module
# --------------------------------------------------------------------------- #
def _reference_kd_loss(inputs, targets, mask=None, reduction="mean", alpha=1.0):
    Ct = targets.shape[1]
    x = inputs[:, :Ct]
    outputs = jax.nn.log_softmax(x, axis=1)
    labels = jax.nn.softmax(targets * alpha, axis=1)
    loss = (outputs * labels).mean(axis=1)
    if mask is not None:
        loss = loss * mask.astype(loss.dtype)
    if reduction == "mean":
        return -jnp.mean(loss)
    elif reduction == "sum":
        return -jnp.sum(loss)
    return -loss


if __name__ == "__main__":
    key = jax.random.PRNGKey(0)
    k1, k2, k3, k4, k5, k6 = jax.random.split(key, 6)

    # Student has more channels than the teacher (module calls narrow(1, 0, Ct)).
    N, C_in, C_t, H, W = 2, 6, 4, 16, 16
    inputs = jax.random.normal(k1, (N, C_in, H, W), jnp.float32)
    targets = jax.random.normal(k2, (N, C_t, H, W), jnp.float32)
    mask = (jax.random.uniform(k3, (N, H, W)) > 0.5).astype(jnp.float32)

    checks = [
        ("mean", None, 1.0),
        ("mean", mask, 1.0),
        ("sum", None, 1.0),
        ("none", mask, 1.0),
        ("mean", None, 2.0),
    ]
    for reduction, m, a in checks:
        got = jax.block_until_ready(
            knowledge_distillation_loss(inputs, targets, m,
                                        reduction=reduction, alpha=a))
        want = _reference_kd_loss(inputs, targets, m, reduction=reduction, alpha=a)
        assert jnp.allclose(got, want, rtol=1e-3, atol=1e-4), (reduction, a, got, want)

    # Ragged-HW path: force lane tiling so the last tile is partial.
    Hr = Wr = 13
    xr = jax.random.normal(k4, (N, C_in, Hr, Wr), jnp.float32)
    tr = jax.random.normal(k5, (N, C_t, Hr, Wr), jnp.float32)
    mr = (jax.random.uniform(k6, (N, Hr, Wr)) > 0.5).astype(jnp.float32)
    got = jax.block_until_ready(
        knowledge_distillation_loss(xr, tr, mr, reduction="mean",
                                    _force_tile_hw=128))
    want = _reference_kd_loss(xr, tr, mr, reduction="mean")
    assert jnp.allclose(got, want, rtol=1e-3, atol=1e-4), ("ragged mean", got, want)

    got = jax.block_until_ready(
        knowledge_distillation_loss(xr, tr, None, reduction="none",
                                    _force_tile_hw=128))
    want = _reference_kd_loss(xr, tr, None, reduction="none")
    assert jnp.allclose(got, want, rtol=1e-3, atol=1e-4), "ragged none"

    # Pack-aligned teacher channels -> student block skips unused channels.
    Na, Ca_in, Ca_t, Ha, Wa = 2, 12, 8, 8, 8
    xa = jax.random.normal(k4, (Na, Ca_in, Ha, Wa), jnp.float32)
    ta = jax.random.normal(k5, (Na, Ca_t, Ha, Wa), jnp.float32)
    got = jax.block_until_ready(
        knowledge_distillation_loss(xa, ta, None, reduction="mean"))
    want = _reference_kd_loss(xa, ta, None, reduction="mean")
    assert jnp.allclose(got, want, rtol=1e-3, atol=1e-4), "aligned Ct"

    print("KERNEL_OK")
</pallas_src>

<mosaic_0001>
module attributes {stable_mosaic.version = 11 : i64} {
  func.func @_kd_reduce_kernel(%arg0: i32, %arg1: i32, %arg2: memref<1x6x256xf32, #tpu.memory_space<vmem>>, %arg3: memref<1x4x256xf32, #tpu.memory_space<vmem>>, %arg4: memref<1x1x1x1xf32, #tpu.memory_space<vmem>>) attributes {dimension_semantics = [#tpu.dimension_semantics<parallel>, #tpu.dimension_semantics<parallel>], iteration_bounds = array<i64: 2, 1>, scalar_prefetch = 0 : i64, scratch_operands = 0 : i64, tpu.core_type = #tpu.core_type<tc>, window_params = [{transform_indices = @transform_0, window_bounds = array<i64: 1, 6, 256>}, {transform_indices = @transform_1, window_bounds = array<i64: 1, 4, 256>}, {transform_indices = @transform_2, window_bounds = array<i64: 1, 1, 1, 1>}]} {
    %c0 = arith.constant 0 : index
    %c0_0 = arith.constant 0 : index
    %c0_1 = arith.constant 0 : index
    %0 = vector.load %arg2[%c0, %c0_0, %c0_1] : memref<1x6x256xf32, #tpu.memory_space<vmem>>, vector<1x4x256xf32>
    %1 = vector.shape_cast %0 : vector<1x4x256xf32> to vector<4x256xf32>
    %c0_2 = arith.constant 0 : index
    %c0_3 = arith.constant 0 : index
    %c0_4 = arith.constant 0 : index
    %2 = vector.load %arg3[%c0_2, %c0_3, %c0_4] : memref<1x4x256xf32, #tpu.memory_space<vmem>>, vector<1x4x256xf32>
    %3 = vector.shape_cast %2 : vector<1x4x256xf32> to vector<4x256xf32>
    %cst = arith.constant dense<0xFF800000> : vector<256xf32>
    %4 = vector.multi_reduction <maximumf>, %1, %cst [0] : vector<4x256xf32> to vector<256xf32>
    %5 = vector.shape_cast %4 : vector<256xf32> to vector<1x256xf32>
    %6 = vector.broadcast %5 : vector<1x256xf32> to vector<4x256xf32>
    %7 = arith.subf %1, %6 : vector<4x256xf32>
    %8 = math.exp %7 : vector<4x256xf32>
    %cst_5 = arith.constant dense<0.000000e+00> : vector<256xf32>
    %9 = vector.multi_reduction <add>, %8, %cst_5 [0] : vector<4x256xf32> to vector<256xf32>
    %10 = vector.shape_cast %9 : vector<256xf32> to vector<1x256xf32>
    %11 = math.log %10 : vector<1x256xf32>
    %cst_6 = arith.constant dense<0xFF800000> : vector<256xf32>
    %12 = vector.multi_reduction <maximumf>, %3, %cst_6 [0] : vector<4x256xf32> to vector<256xf32>
    %13 = vector.shape_cast %12 : vector<256xf32> to vector<1x256xf32>
    %14 = vector.broadcast %13 : vector<1x256xf32> to vector<4x256xf32>
    %15 = arith.subf %3, %14 : vector<4x256xf32>
    %16 = math.exp %15 : vector<4x256xf32>
    %cst_7 = arith.constant dense<0.000000e+00> : vector<256xf32>
    %17 = vector.multi_reduction <add>, %16, %cst_7 [0] : vector<4x256xf32> to vector<256xf32>
    %18 = vector.shape_cast %17 : vector<256xf32> to vector<1x256xf32>
    %19 = tpu.reciprocal %18 {approx = true} : vector<1x256xf32> -> vector<1x256xf32>
    %20 = arith.mulf %18, %19 : vector<1x256xf32>
    %cst_8 = arith.constant 2.000000e+00 : f32
    %21 = vector.broadcast %cst_8 : f32 to vector<1x256xf32>
    %22 = arith.subf %21, %20 : vector<1x256xf32>
    %23 = arith.mulf %19, %22 : vector<1x256xf32>
    %24 = arith.mulf %7, %16 : vector<4x256xf32>
    %cst_9 = arith.constant dense<0.000000e+00> : vector<256xf32>
    %25 = vector.multi_reduction <add>, %24, %cst_9 [0] : vector<4x256xf32> to vector<256xf32>
    %26 = vector.shape_cast %25 : vector<256xf32> to vector<1x256xf32>
    %27 = arith.mulf %26, %23 : vector<1x256xf32>
    %28 = arith.subf %27, %11 : vector<1x256xf32>
    %cst_10 = arith.constant 2.500000e-01 : f32
    %29 = vector.broadcast %cst_10 : f32 to vector<1x256xf32>
    %30 = arith.mulf %28, %29 : vector<1x256xf32>
    %31 = vector.shape_cast %30 : vector<1x256xf32> to vector<1x1x256xf32>
    %cst_11 = arith.constant dense<0.000000e+00> : vector<1xf32>
    %32 = vector.multi_reduction <add>, %31, %cst_11 [1, 2] : vector<1x1x256xf32> to vector<1xf32>
    %33 = vector.shape_cast %32 : vector<1xf32> to vector<1x1x1xf32>
    %34 = vector.extract %33[0, 0, 0] : f32 from vector<1x1x1xf32>
    %35 = vector.broadcast %34 : f32 to vector<1x1xf32>
    %c0_12 = arith.constant 0 : index
    %c0_13 = arith.constant 0 : index
    %c0_14 = arith.constant 0 : index
    %c0_15 = arith.constant 0 : index
    %36 = vector.load %arg4[%c0_12, %c0_13, %c0_14, %c0_15] : memref<1x1x1x1xf32, #tpu.memory_space<vmem>>, vector<1x1x1x1xf32>
    %37 = vector.shape_cast %36 : vector<1x1x1x1xf32> to vector<1x1xf32>
    %38 = vector.shape_cast %35 : vector<1x1xf32> to vector<1x1x1x1xf32>
    tpu.vector_store %arg4[%c0_12, %c0_13, %c0_14, %c0_15], %38 {strides = array<i32>} : memref<1x1x1x1xf32, #tpu.memory_space<vmem>>, vector<1x1x1x1xf32>,
    return
  }
  func.func @transform_0(%arg0: i32, %arg1: i32) -> (i32, i32, i32) {
    %c0_i32 = arith.constant 0 : i32
    %c0_i32_0 = arith.constant 0 : i32
    return %arg0, %c0_i32, %arg1 : i32, i32, i32
  }
  func.func @transform_1(%arg0: i32, %arg1: i32) -> (i32, i32, i32) {
    %c0_i32 = arith.constant 0 : i32
    %c0_i32_0 = arith.constant 0 : i32
    return %arg0, %c0_i32, %arg1 : i32, i32, i32
  }
  func.func @transform_2(%arg0: i32, %arg1: i32) -> (i32, i32, i32, i32) {
    %c0_i32 = arith.constant 0 : i32
    %c0_i32_0 = arith.constant 0 : i32
    %c0_i32_1 = arith.constant 0 : i32
    return %arg0, %arg1, %c0_i32, %c0_i32_0 : i32, i32, i32, i32
  }
}

</mosaic_0001>

<llo_original>
// kernel: tpu_custom_call.1
$region0: #{tpu_custom_call.1}
  #allocation0 [shape = 'u32[]', space=smem, size = 0x4, offset = 0x4, fixed_abs, tag = 'smem constant byte address 0x4 - core index']
  #allocation1 [shape = 'u32[144,128]{1,0:T(1,128)}', space=vmem, size = 0x12000, scoped, tag = 'internal scratch']
  %s0 = inlined_call_operand.vmem [shape: f32[2,6,256], index: 0, kind: input, shape index: {}]
  %s1 = inlined_call_operand.vmem [shape: f32[2,4,256], index: 1, kind: input, shape index: {}]
  %s2 = inlined_call_operand.vmem [shape: f32[2,1,1,1], index: 2, kind: output, shape index: {}]
  %s3 = sld [smem:[#allocation0]]
  $region41: #{tpu_custom_call.1} parent=0
    _
  %s5 = ssub.s32 1, %s3
  %s6 = scalar_select 0, %s5, %s3
  loop: start=0, step=1, limit=4
  $region2: #{tpu_custom_call.1} parent=0 // loop_pre_header
    _
  $region3: #{tpu_custom_call.1} parent=0 // loop_header
    %s8 = sphi 0, %s12
    %p9 = scmp.ge.s32.totalorder %s8, 4
    %s15 = sphi 0, %s27
    %s16 = sphi 0, %s23
    %s17 = sphi 0, %s15
    %s18 = sphi 0, %s16
    %s19 = sphi 0, %s17
    %s20 = sphi 0, %s18
    %s32 = sphi 0, %s34
    %s35 = sphi 0, %s32
    %s36 = sphi 0, %s35
    %s52 = sphi 0, %s36
    %s60 = sphi 0, %s62
    %s63 = sphi 0, %s60
    %s64 = sphi 0, %s63
    %s80 = sphi 0, %s64
    %s88 = sphi 0, %s90
    %s91 = sphi 0, %s88
    %s92 = sphi 0, %s91
    %s108 = sphi 0, %s92
  $region4: #{tpu_custom_call.1} parent=0 // loop_header_branch
    %11 = sbr.rel (%p9) target = $region8
  $region5: #{tpu_custom_call.1} parent=0 // loop_body
    %s13 = ssub.s32 %s8, 1
    %s14 = ssub.s32 %s8, 2
    %s21 = sadd.s32 1, %s16
    %p22 = scmp.ge.s32.totalorder %s21, 1
    %s23 = scalar_select %p22, 0, %s21
    %s24 = sadd.s32 1, %s15
    %s25 = scalar_select %p22, %s24, %s15
    %p26 = scmp.ge.s32.totalorder %s25, 2
    %s27 = scalar_select %p26, 0, %s25
    %s28 = ssub.s32 %s15, %s27
    %s29 = ssub.s32 %s16, %s23
    %s30 = sor.u32 %s28, %s29
    %p31 = scmp.eq.s32.totalorder %s30, 0
    %s33 = sadd.s32 %s32, 1
    %s34 = scalar_select %p31, %s32, %s33
    %p37 = pneg %p31
    %p38 = scmp.eq.s32.totalorder %s8, 1
    %p39 = por %p37, %p38
    %p40 = scmp.ne.s32.totalorder %s32, %s35
    %p41 = scmp.eq.s32.totalorder %s8, 0
    %p42 = por %p40, %p41
    %p43 = scmp.ne.s32.totalorder %s32, %s35
    %p44 = scmp.eq.s32.totalorder %s13, 1
    %p45 = por %p43, %p44
    %p46 = scmp.ne.s32.totalorder %s35, %s36
    %p47 = scmp.eq.s32.totalorder %s13, 0
    %p48 = por %p46, %p47
    %p49 = scmp.ne.s32.totalorder %s35, %s36
    %p50 = scmp.eq.s32.totalorder %s14, 1
    %p51 = por %p49, %p50
    %p53 = scmp.ne.s32.totalorder %s36, %s52
    %p54 = scmp.eq.s32.totalorder %s14, 0
    %p55 = por %p53, %p54
    %s56 = ssub.s32 %s15, %s27
    %s57 = ssub.s32 %s16, %s23
    %s58 = sor.u32 %s56, %s57
    %p59 = scmp.eq.s32.totalorder %s58, 0
    %s61 = sadd.s32 %s60, 1
    %s62 = scalar_select %p59, %s60, %s61
    %p65 = pneg %p59
    %p66 = scmp.eq.s32.totalorder %s8, 1
    %p67 = por %p65, %p66
    %p68 = scmp.ne.s32.totalorder %s60, %s63
    %p69 = scmp.eq.s32.totalorder %s8, 0
    %p70 = por %p68, %p69
    %p71 = scmp.ne.s32.totalorder %s60, %s63
    %p72 = scmp.eq.s32.totalorder %s13, 1
    %p73 = por %p71, %p72
    %p74 = scmp.ne.s32.totalorder %s63, %s64
    %p75 = scmp.eq.s32.totalorder %s13, 0
    %p76 = por %p74, %p75
    %p77 = scmp.ne.s32.totalorder %s63, %s64
    %p78 = scmp.eq.s32.totalorder %s14, 1
    %p79 = por %p77, %p78
    %p81 = scmp.ne.s32.totalorder %s64, %s80
    %p82 = scmp.eq.s32.totalorder %s14, 0
    %p83 = por %p81, %p82
    %s84 = ssub.s32 %s15, %s27
    %s85 = ssub.s32 %s16, %s23
    %s86 = sor.u32 %s84, %s85
    %p87 = scmp.eq.s32.totalorder %s86, 0
    %s89 = sadd.s32 %s88, 1
    %s90 = scalar_select %p87, %s88, %s89
    %p93 = pneg %p87
    %p94 = scmp.eq.s32.totalorder %s8, 1
    %p95 = por %p93, %p94
    %p96 = scmp.ne.s32.totalorder %s88, %s91
    %p97 = scmp.eq.s32.totalorder %s8, 0
    %p98 = por %p96, %p97
    %p99 = scmp.ne.s32.totalorder %s88, %s91
    %p100 = scmp.eq.s32.totalorder %s13, 1
    %p101 = por %p99, %p100
    %p102 = scmp.ne.s32.totalorder %s91, %s92
    %p103 = scmp.eq.s32.totalorder %s13, 0
    %p104 = por %p102, %p103
    %p105 = scmp.ne.s32.totalorder %s91, %s92
    %p106 = scmp.eq.s32.totalorder %s14, 1
    %p107 = por %p105, %p106
    %p109 = scmp.ne.s32.totalorder %s92, %s108
    %p110 = scmp.eq.s32.totalorder %s14, 0
    %p111 = por %p109, %p110
    %p112 = scmp.le.s32.totalorder 1, %s8
    %p113 = scmp.lt.s32.totalorder %s8, 3
    %p114 = pnand %p112, %p113
    %p115 = pneg %p114
    // Predicated region
    $region9: #{tpu_custom_call.1} parent=5 // pred_check
      _
    $region10: #{tpu_custom_call.1} parent=5 // pred_check_branch
      %117 = sbr.rel (%p114) target = $region12
    $region11: #{tpu_custom_call.1} parent=5 // pred_region
      %s118 = ssub.s32 %s8, 1
    $region12: #{tpu_custom_call.1} parent=5 // pred_fallthru
      _
    %p119 = scmp.lt.s32.totalorder %s8, 2
    // Predicated region
    $region13: #{tpu_custom_call.1} parent=5 // pred_check
      %p120 = pneg %p119
    $region14: #{tpu_custom_call.1} parent=5 // pred_check_branch
      %122 = sbr.rel (%p120) target = $region16
    $region15: #{tpu_custom_call.1} parent=5 // pred_region
      // Predicated region
      $region17: #{tpu_custom_call.1} parent=15 // pred_check
        %p123 = pneg %p42
      $region18: #{tpu_custom_call.1} parent=15 // pred_check_branch
        %125 = sbr.rel (%p123) target = $region20
      $region19: #{tpu_custom_call.1} parent=15 // pred_region
        %s126 = smul.u32 2, %s16
        %p127 = scmp.lt.s32.totalorder %s15, 1
        %s128 = scalar_select %p127, %s15, 1
        %p129 = scmp.lt.s32.totalorder %s126, 1
        %s130 = scalar_select %p129, %s126, 1
        %s131 = smul.addr %s128, 2
        %s132 = sadd.s32 %s130, %s131
        %s133 = smul.addr %s132, 8
        %s134 = scalar_lea.vmem %s0, %s133
        %s135 = smul.u32 2, %s16
      $region20: #{tpu_custom_call.1} parent=15 // pred_fallthru
        _
      // Predicated region
      $region21: #{tpu_custom_call.1} parent=15 // pred_check
        %p136 = pneg %p70
      $region22: #{tpu_custom_call.1} parent=15 // pred_check_branch
        %138 = sbr.rel (%p136) target = $region24
      $region23: #{tpu_custom_call.1} parent=15 // pred_region
        %s139 = smul.u32 2, %s16
        %p140 = scmp.lt.s32.totalorder %s15, 1
        %s141 = scalar_select %p140, %s15, 1
        %p142 = scmp.lt.s32.totalorder %s139, 1
        %s143 = scalar_select %p142, %s139, 1
        %s144 = smul.addr %s141, 2
        %s145 = sadd.s32 %s143, %s144
        %s146 = smul.addr %s145, 4
        %s147 = scalar_lea.vmem %s1, %s146
        %s148 = smul.u32 2, %s16
      $region24: #{tpu_custom_call.1} parent=15 // pred_fallthru
        _
    $region16: #{tpu_custom_call.1} parent=5 // pred_fallthru
      _
    %p149 = scmp.le.s32.totalorder 1, %s8
    %p150 = scmp.lt.s32.totalorder %s8, 3
    %p151 = pnand %p149, %p150
    %p152 = pneg %p151
    // Predicated region
    $region25: #{tpu_custom_call.1} parent=5 // pred_check
      _
    $region26: #{tpu_custom_call.1} parent=5 // pred_check_branch
      %154 = sbr.rel (%p151) target = $region28
    $region27: #{tpu_custom_call.1} parent=5 // pred_region
      %s155 = ssub.s32 %s8, 1
      %s156 = smul.u32 2, %s18
      %p157 = scmp.lt.s32.totalorder %s17, 1
      %s158 = scalar_select %p157, %s17, 1
      %p159 = scmp.lt.s32.totalorder %s156, 1
      %s160 = scalar_select %p159, %s156, 1
      %s161 = smul.addr %s158, 2
      %s162 = sadd.s32 %s160, %s161
      %s163 = smul.addr %s162, 8
      %s164 = scalar_lea.vmem %s0, %s163
      %p165 = pneg %p48
      %p166 = pneg %p45
      %s167 = smul.u32 2, %s18
      %p168 = scmp.lt.s32.totalorder %s17, 1
      %s169 = scalar_select %p168, %s17, 1
      %p170 = scmp.lt.s32.totalorder %s167, 1
      %s171 = scalar_select %p170, %s167, 1
      %s172 = smul.addr %s169, 2
      %s173 = sadd.s32 %s171, %s172
      %s174 = smul.addr %s173, 4
      %s175 = scalar_lea.vmem %s1, %s174
      %p176 = pneg %p76
      %p177 = pneg %p73
      %p178 = pneg %p104
      %p179 = pneg %p101
      %p180 = scmp.lt.s32.totalorder %s17, 1
      %s181 = scalar_select %p180, %s17, 1
      %p182 = scmp.lt.s32.totalorder %s18, 0
      %s183 = scalar_select %p182, %s18, 0
      %s184 = sadd.s32 %s183, %s181
      %s185 = scalar_lea.vmem %s2, %s184
      %s186 = smul.u32 2, %s18
      %p187 = scmp.lt.s32.totalorder %s17, 1
      %s188 = scalar_select %p187, %s17, 1
      %p189 = scmp.lt.s32.totalorder %s186, 1
      %s190 = scalar_select %p189, %s186, 1
      %s191 = smul.addr %s188, 2
      %s192 = sadd.s32 %s190, %s191
      %s193 = smul.addr %s192, 8
      %s194 = scalar_lea.vmem %s0, %s193
      %s195 = smul.u32 2, %s18
      %s196 = smul.u32 2, %s18
      %p197 = scmp.lt.s32.totalorder %s17, 1
      %s198 = scalar_select %p197, %s17, 1
      %p199 = scmp.lt.s32.totalorder %s196, 1
      %s200 = scalar_select %p199, %s196, 1
      %s201 = smul.addr %s198, 2
      %s202 = sadd.s32 %s200, %s201
      %s203 = smul.addr %s202, 4
      %s204 = scalar_lea.vmem %s1, %s203
      %s205 = smul.u32 2, %s18
      %p206 = scmp.lt.s32.totalorder %s17, 1
      %s207 = scalar_select %p206, %s17, 1
      %p208 = scmp.lt.s32.totalorder %s18, 0
      %s209 = scalar_select %p208, %s18, 0
      %s210 = sadd.s32 %s209, %s207
      %s211 = scalar_lea.vmem %s2, %s210
      %v212 = vld [vmem:[%s194] sm:$0xf]
      %v213 = vld [vmem:[%s194 + $0x8] sm:$0xf]
      %v214 = vld [vmem:[%s204] sm:$0xff]
      %vm215 = vcmask 1043456
      %v216 = vsel %vm215, %v212, -inf
      %v217 = vrot.slane %v216, 4
      %v218 = vmax.f32 %v216, %v217
      %v219 = vrot.slane %v218, 2
      %v220 = vmax.f32 %v218, %v219
      %v221 = vrot.slane %v220, 1
      %v222 = vmax.f32 %v220, %v221
      %v223 = vsel %vm215, %v213, -inf
      %v224 = vrot.slane %v223, 4
      %v225 = vmax.f32 %v223, %v224
      %v226 = vrot.slane %v225, 2
      %v227 = vmax.f32 %v225, %v226
      %v228 = vrot.slane %v227, 1
      %v229 = vmax.f32 %v227, %v228
      %v230 = vsub.f32 %v212, %v222
      %v231 = vsub.f32 %v213, %v229
      %v232 = vmul.f32 %v230, 1.442695
      %v233 = vpow.pop %v232
      %v234 = vmul.f32 %v231, 1.442695
      %v235 = vpow.pop %v234
      %v236 = vsel %vm215, %v233, 0.0
      %v237 = vrot.slane %v236, 4
      %v238 = vadd.f32 %v236, %v237
      %v239 = vrot.slane %v238, 2
      %v240 = vadd.f32 %v238, %v239
      %v241 = vrot.slane %v240, 1
      %v242 = vadd.f32 %v240, %v241
      %v243 = vsel %vm215, %v235, 0.0
      %v244 = vrot.slane %v243, 4
      %v245 = vadd.f32 %v243, %v244
      %v246 = vrot.slane %v245, 2
      %v247 = vadd.f32 %v245, %v246
      %v248 = vrot.slane %v247, 1
      %v249 = vadd.f32 %v247, %v248
      %v250 = vlog2.pop %v242
      %v251 = vmul.f32 %v250, 0.6931472
      %v252 = vlog2.pop %v249
      %v253 = vmul.f32 %v252, 0.6931472
      %v255 = vcombine.high %v214, %v214
      %v257 = vsel %vm215, %v214, -inf
      %v258 = vrot.slane %v257, 4
      %v259 = vmax.f32 %v257, %v258
      %v260 = vrot.slane %v259, 2
      %v261 = vmax.f32 %v259, %v260
      %v262 = vrot.slane %v261, 1
      %v263 = vmax.f32 %v261, %v262
      %v264 = vsel %vm215, %v255, -inf
      %v265 = vrot.slane %v264, 4
      %v266 = vmax.f32 %v264, %v265
      %v267 = vrot.slane %v266, 2
      %v268 = vmax.f32 %v266, %v267
      %v269 = vrot.slane %v268, 1
      %v270 = vmax.f32 %v268, %v269
      %v273 = vcombine.low %v263, %v270
      %v275 = vsub.f32 %v214, %v273
      %v276 = vmul.f32 %v275, 1.442695
      %v277 = vpow.pop %v276
      %v279 = vcombine.high %v277, %v277
      %v281 = vsel %vm215, %v277, 0.0
      %v282 = vrot.slane %v281, 4
      %v283 = vadd.f32 %v281, %v282
      %v284 = vrot.slane %v283, 2
      %v285 = vadd.f32 %v283, %v284
      %v286 = vrot.slane %v285, 1
      %v287 = vadd.f32 %v285, %v286
      %v288 = vsel %vm215, %v279, 0.0
      %v289 = vrot.slane %v288, 4
      %v290 = vadd.f32 %v288, %v289
      %v291 = vrot.slane %v290, 2
      %v292 = vadd.f32 %v290, %v291
      %v293 = vrot.slane %v292, 1
      %v294 = vadd.f32 %v292, %v293
      %v295 = vrcp.pop %v287
      %v296 = vrcp.pop %v294
      %v297 = vmul.f32 %v287, %v295
      %v298 = vmul.f32 %v294, %v296
      %v299 = vsub.f32 2.0, %v297
      %v300 = vsub.f32 2.0, %v298
      %v301 = vmul.f32 %v295, %v299
      %v302 = vmul.f32 %v296, %v300
      %v303 = vmul.f32 %v230, %v277
      %v304 = vmul.f32 %v231, %v279
      %v305 = vsel %vm215, %v303, 0.0
      %v306 = vrot.slane %v305, 4
      %v307 = vadd.f32 %v305, %v306
      %v308 = vrot.slane %v307, 2
      %v309 = vadd.f32 %v307, %v308
      %v310 = vrot.slane %v309, 1
      %v311 = vadd.f32 %v309, %v310
      %v312 = vsel %vm215, %v304, 0.0
      %v313 = vrot.slane %v312, 4
      %v314 = vadd.f32 %v312, %v313
      %v315 = vrot.slane %v314, 2
      %v316 = vadd.f32 %v314, %v315
      %v317 = vrot.slane %v316, 1
      %v318 = vadd.f32 %v316, %v317
      %v319 = vmul.f32 %v311, %v301
      %v320 = vmul.f32 %v318, %v302
      %v321 = vsub.f32 %v319, %v251
      %v322 = vsub.f32 %v320, %v253
      %v323 = vmul.f32 %v321, 0.25
      %v324 = vmul.f32 %v322, 0.25
      %vm325 = vcmask 1040384
      %v326 = vsel %vm325, %v323, 0.0
      %v327 = vsel %vm325, %v324, 0.0
      %v328 = vadd.f32 %v326, %v327
      %329 = vadd.xlane.f32.xlu0 %v328
      %v330 = vpop.xlane.xlu0 %329
      %v331 = vrot.slane %v330, 4
      %v332 = vadd.f32 %v330, %v331
      %v333 = vrot.slane %v332, 2
      %v334 = vadd.f32 %v332, %v333
      %v335 = vrot.slane %v334, 1
      %v336 = vadd.f32 %v334, %v335
      %s337 = vtos %v336
      %v338 = vstv %s337
      %vm339 = vcmask 0
      %340 = vst.msk [vmem:[%s211] sm:$0x1] %vm339, %v338
      %p341 = scmp.lt.s32.totalorder %s17, 1
      %s342 = scalar_select %p341, %s17, 1
      %p343 = scmp.lt.s32.totalorder %s18, 0
      %s344 = scalar_select %p343, %s18, 0
      %s345 = sadd.s32 %s344, %s342
      %s346 = scalar_lea.vmem %s2, %s345
      // Predicated region
      $region29: #{tpu_custom_call.1} parent=27 // pred_check
        %p347 = pneg %p101
      $region30: #{tpu_custom_call.1} parent=27 // pred_check_branch
        %349 = sbr.rel (%p347) target = $region32
      $region31: #{tpu_custom_call.1} parent=27 // pred_region
        _
      $region32: #{tpu_custom_call.1} parent=27 // pred_fallthru
        _
    $region28: #{tpu_custom_call.1} parent=5 // pred_fallthru
      _
    %p350 = scmp.le.s32.totalorder 2, %s8
    // Predicated region
    $region33: #{tpu_custom_call.1} parent=5 // pred_check
      %p351 = pneg %p350
    $region34: #{tpu_custom_call.1} parent=5 // pred_check_branch
      %353 = sbr.rel (%p351) target = $region36
    $region35: #{tpu_custom_call.1} parent=5 // pred_region
      %s354 = ssub.s32 %s8, 2
      // Predicated region
      $region37: #{tpu_custom_call.1} parent=35 // pred_check
        %p355 = pneg %p107
      $region38: #{tpu_custom_call.1} parent=35 // pred_check_branch
        %357 = sbr.rel (%p355) target = $region40
      $region39: #{tpu_custom_call.1} parent=35 // pred_region
        %p358 = scmp.lt.s32.totalorder %s19, 1
        %s359 = scalar_select %p358, %s19, 1
        %p360 = scmp.lt.s32.totalorder %s20, 0
        %s361 = scalar_select %p360, %s20, 0
        %s362 = sadd.s32 %s361, %s359
        %s363 = scalar_lea.vmem %s2, %s362
      $region40: #{tpu_custom_call.1} parent=35 // pred_fallthru
        _
    $region36: #{tpu_custom_call.1} parent=5 // pred_fallthru
      _
  $region6: #{tpu_custom_call.1} parent=0 // loop_footer
    %s12 = sadd.s32 1, %s8
  $region7: #{tpu_custom_call.1} parent=0 // loop_footer_branch
    %7 = sbr.rel target = $region3
  $region8: #{tpu_custom_call.1} parent=0 // loop_exit
    _

</llo_original>
